<compile_context>
chip_gen: v5e
topology: v5e:2x2
jax: 0.10.0
libtpu: 0.0.40
codegen_flags: <defaults>
</compile_context>

<pallas_src>
import jax
import jax.numpy as jnp
from jax.experimental import pallas as pl
from jax.experimental.pallas import tpu as pltpu


# ----------------------------------------------------------------------------
# Kernels
# ----------------------------------------------------------------------------
def _nconv_blockdiag_kernel(abd_ref, x_ref, o_ref):
    # abd: (cb*V, cb*W) block-diagonal A;  x: (1, cb, W, L);  o: (1, cb, V, L)
    _, cb, w, l = x_ref.shape
    v = o_ref.shape[2]
    x2 = x_ref[...].reshape(cb * w, l)          # tile-exact -> free view
    y = jnp.dot(abd_ref[...], x2, preferred_element_type=jnp.float32)
    o_ref[...] = y.reshape(1, cb, v, l).astype(o_ref.dtype)


def _nconv_loop_kernel(a_ref, x_ref, o_ref):
    # Fallback for shapes where the packed reshape would not be tile-exact:
    # per-channel 2-D matmuls with a stationary A and lane-dense (V, L) stores.
    a = a_ref[...]                              # (V, W)
    for c in range(x_ref.shape[1]):
        o_ref[0, c] = jnp.dot(a, x_ref[0, c],
                              preferred_element_type=jnp.float32).astype(o_ref.dtype)


# ----------------------------------------------------------------------------
# Wrapper
# ----------------------------------------------------------------------------
def _pick_cb(C, V, W):
    # Keep the packed contraction depth around 128 (one systolic pass on v5e,
    # half a pass on v6e/v7x) while dividing C evenly.
    target = max(1, 128 // max(V, W))
    for d in range(min(C, target), 0, -1):
        if C % d == 0:
            return d
    return 1


def nconv(x, A):
    """out[n, c, v, l] = sum_w x[n, c, w, l] * A[v, w]  (torch nconv.forward)."""
    B, C, W, L = x.shape
    V, W2 = A.shape
    assert W2 == W, (A.shape, x.shape)

    cb = _pick_cb(C, V, W)
    grid = (B, C // cb)

    aligned = (V % 8 == 0) and (W % 8 == 0) and (L % 128 == 0)
    if aligned:
        kernel = _nconv_blockdiag_kernel
        # Hoisted weight packing: block-diagonal A so each grid step is ONE
        # (cb*V, cb*W) @ (cb*W, L) MXU matmul instead of cb tiny ones.
        a_in = jnp.kron(jnp.eye(cb, dtype=A.dtype), A)     # (cb*V, cb*W)
    else:
        kernel = _nconv_loop_kernel
        a_in = A

    a_spec = pl.BlockSpec(a_in.shape, lambda b, c: (0, 0))
    x_spec = pl.BlockSpec((1, cb, W, L), lambda b, c: (b, c, 0, 0))
    o_spec = pl.BlockSpec((1, cb, V, L), lambda b, c: (b, c, 0, 0))

    return pl.pallas_call(
        kernel,
        grid=grid,
        in_specs=[a_spec, x_spec],
        out_specs=o_spec,
        out_shape=jax.ShapeDtypeStruct((B, C, V, L), x.dtype),
        compiler_params=pltpu.CompilerParams(
            dimension_semantics=("parallel", "parallel")),
    )(a_in, x)


# ----------------------------------------------------------------------------
if __name__ == "__main__":
    key = jax.random.PRNGKey(0)
    kx, ka = jax.random.split(key)

    Bsz, C, N_NODES, L = 2, 16, 16, 128            # x: [N, C, W=num_nodes, L]
    x = jax.random.normal(kx, (Bsz, C, N_NODES, L), jnp.float32)
    # Row-normalized random adjacency (as the surrounding graph model uses).
    A = jax.random.uniform(ka, (N_NODES, N_NODES), jnp.float32)
    A = A / jnp.sum(A, axis=1, keepdims=True)

    out = jax.block_until_ready(nconv(x, A))
    ref = jax.block_until_ready(jnp.einsum('ncwl,vw->ncvl', x, A))

    assert out.shape == (Bsz, C, N_NODES, L), out.shape
    max_err = float(jnp.max(jnp.abs(out - ref)))
    assert max_err < 2e-2, f"mismatch vs reference: {max_err}"
    print("KERNEL_OK")
</pallas_src>

<mosaic_0001>
module attributes {stable_mosaic.version = 11 : i64} {
  func.func @_nconv_blockdiag_kernel(%arg0: i32, %arg1: i32, %arg2: memref<128x128xf32, #tpu.memory_space<vmem>>, %arg3: memref<1x8x16x128xf32, #tpu.memory_space<vmem>>, %arg4: memref<1x8x16x128xf32, #tpu.memory_space<vmem>>) attributes {dimension_semantics = [#tpu.dimension_semantics<parallel>, #tpu.dimension_semantics<parallel>], iteration_bounds = array<i64: 2, 2>, scalar_prefetch = 0 : i64, scratch_operands = 0 : i64, tpu.core_type = #tpu.core_type<tc>, window_params = [{pipeline_mode = #tpu.pipeline_mode<synchronous>, transform_indices = @transform_0, window_bounds = array<i64: 128, 128>}, {transform_indices = @transform_1, window_bounds = array<i64: 1, 8, 16, 128>}, {transform_indices = @transform_2, window_bounds = array<i64: 1, 8, 16, 128>}]} {
    %c0 = arith.constant 0 : index
    %c0_0 = arith.constant 0 : index
    %c0_1 = arith.constant 0 : index
    %c0_2 = arith.constant 0 : index
    %0 = vector.load %arg3[%c0, %c0_0, %c0_1, %c0_2] : memref<1x8x16x128xf32, #tpu.memory_space<vmem>>, vector<1x8x16x128xf32>
    %1 = vector.shape_cast %0 : vector<1x8x16x128xf32> to vector<128x128xf32>
    %c0_3 = arith.constant 0 : index
    %c0_4 = arith.constant 0 : index
    %2 = vector.load %arg2[%c0_3, %c0_4] : memref<128x128xf32, #tpu.memory_space<vmem>>, vector<128x128xf32>
    %cst = arith.constant dense<0.000000e+00> : vector<128x128xf32>
    %3 = tpu.matmul %2, %1, %cst {dimension_numbers = #tpu.dot_dimension_numbers<[1], [0], [0], [1], [0, 0, 1, 1], [], []>} : vector<128x128xf32>, vector<128x128xf32>, vector<128x128xf32> -> vector<128x128xf32>
    %4 = vector.shape_cast %3 : vector<128x128xf32> to vector<1x8x16x128xf32>
    %c0_5 = arith.constant 0 : index
    %c0_6 = arith.constant 0 : index
    %c0_7 = arith.constant 0 : index
    %c0_8 = arith.constant 0 : index
    %5 = vector.load %arg4[%c0_5, %c0_6, %c0_7, %c0_8] : memref<1x8x16x128xf32, #tpu.memory_space<vmem>>, vector<1x8x16x128xf32>
    tpu.vector_store %arg4[%c0_5, %c0_6, %c0_7, %c0_8], %4 {strides = array<i32>} : memref<1x8x16x128xf32, #tpu.memory_space<vmem>>, vector<1x8x16x128xf32>,
    return
  }
  func.func @transform_0(%arg0: i32, %arg1: i32) -> (i32, i32) {
    %c0_i32 = arith.constant 0 : i32
    %c0_i32_0 = arith.constant 0 : i32
    %c0_i32_1 = arith.constant 0 : i32
    return %c0_i32, %c0_i32_0 : i32, i32
  }
  func.func @transform_1(%arg0: i32, %arg1: i32) -> (i32, i32, i32, i32) {
    %c0_i32 = arith.constant 0 : i32
    %c0_i32_0 = arith.constant 0 : i32
    %c0_i32_1 = arith.constant 0 : i32
    return %arg0, %arg1, %c0_i32, %c0_i32_0 : i32, i32, i32, i32
  }
  func.func @transform_2(%arg0: i32, %arg1: i32) -> (i32, i32, i32, i32) {
    %c0_i32 = arith.constant 0 : i32
    %c0_i32_0 = arith.constant 0 : i32
    %c0_i32_1 = arith.constant 0 : i32
    return %arg0, %arg1, %c0_i32, %c0_i32_0 : i32, i32, i32, i32
  }
}

</mosaic_0001>

<llo_original>
// kernel: tpu_custom_call.1
$region0: #{tpu_custom_call.1}
  #allocation0 [shape = 'u32[]', space=smem, size = 0x4, offset = 0x4, fixed_abs, tag = 'smem constant byte address 0x4 - core index']
  #allocation1 [shape = 'u32[72,128]{1,0:T(1,128)}', space=vmem, size = 0x9000, scoped, tag = 'internal scratch']
  %s0 = inlined_call_operand.hbm [shape: f32[128,128], index: 0, kind: input, shape index: {}]
  %s1 = inlined_call_operand.hbm [shape: f32[2,16,16,128], index: 1, kind: input, shape index: {}]
  %s2 = inlined_call_operand.hbm [shape: f32[2,16,16,128], index: 2, kind: output, shape index: {}]
  %s3 = sld [smem:[#allocation0]]
  $region49: #{tpu_custom_call.1} parent=0
    _
  %s5 = ssub.s32 1, %s3
  %s6 = scalar_select 0, %s5, %s3
  $region1: #{tpu_custom_call.1} parent=0
    #allocation2 [shape = 'u8[65536]{0}', space=vmem, size = 0x10000, scoped, tag = 'input window, operand 0, single buffered']
    #allocation3 [shape = 's32[2]{0}', space=sflag, size = 0x8, scoped, tag = 'scoped memory for tpu_custom_call.1']
    #allocation4 [shape = 's32[2]{0}', space=sflag, size = 0x8, scoped, tag = 'scoped memory for tpu_custom_call.1']
    #allocation5 [shape = 'u8[131072]{0}', space=vmem, size = 0x20000, scoped, tag = 'input window, operand 1']
    #allocation6 [shape = 's32[2]{0}', space=sflag, size = 0x8, scoped, tag = 'scoped memory for tpu_custom_call.1']
    #allocation7 [shape = 'u8[131072]{0}', space=vmem, size = 0x20000, scoped, tag = 'output window, operand 0']
    %7 = vsyncpa [#allocation3], 0
    %8 = vsyncpa [#allocation6], 0
    %s9 = scalar_lea.sflag [#allocation6], 1
    %10 = vsyncpa %s9, 0
    %11 = vsyncpa [#allocation4], 0
    %s12 = scalar_lea.sflag [#allocation4], 1
    %13 = vsyncpa %s12, 0
    loop: start=0, step=1, limit=6
    $region2: #{tpu_custom_call.1} parent=1 // loop_pre_header
      _
    $region3: #{tpu_custom_call.1} parent=1 // loop_header
      %s15 = sphi 0, %s19
      %p16 = scmp.ge.s32.totalorder %s15, 6
      %s22 = sphi 0, %s34
      %s23 = sphi 0, %s30
      %s24 = sphi 0, %s22
      %s25 = sphi 0, %s23
      %s26 = sphi 0, %s24
      %s27 = sphi 0, %s25
      %s35 = sphi 0, %s35
      %s37 = sphi 0, %s35
      %s38 = sphi 0, %s37
      %s52 = sphi 0, %s38
      %s60 = sphi 0, %s62
      %s63 = sphi 0, %s60
      %s64 = sphi 0, %s63
      %s80 = sphi 0, %s64
      %s88 = sphi 0, %s90
      %s91 = sphi 0, %s88
      %s92 = sphi 0, %s91
      %s108 = sphi 0, %s92
    $region4: #{tpu_custom_call.1} parent=1 // loop_header_branch
      %18 = sbr.rel (%p16) target = $region8
    $region5: #{tpu_custom_call.1} parent=1 // loop_body
      %s20 = ssub.s32 %s15, 1
      %s21 = ssub.s32 %s15, 2
      %s28 = sadd.s32 1, %s23
      %p29 = scmp.ge.s32.totalorder %s28, 2
      %s30 = scalar_select %p29, 0, %s28
      %s31 = sadd.s32 1, %s22
      %s32 = scalar_select %p29, %s31, %s22
      %p33 = scmp.ge.s32.totalorder %s32, 2
      %s34 = scalar_select %p33, 0, %s32
      %s36 = sadd.s32 %s35, 1
      %p39 = scmp.eq.s32.totalorder %s15, 3
      %p40 = scmp.ne.s32.totalorder %s35, %s37
      %p41 = scmp.eq.s32.totalorder %s15, 0
      %p42 = por %p40, %p41
      %p43 = scmp.ne.s32.totalorder %s35, %s37
      %p44 = scmp.eq.s32.totalorder %s20, 3
      %p45 = por %p43, %p44
      %p46 = scmp.ne.s32.totalorder %s37, %s38
      %p47 = scmp.eq.s32.totalorder %s20, 0
      %p48 = por %p46, %p47
      %p49 = scmp.ne.s32.totalorder %s37, %s38
      %p50 = scmp.eq.s32.totalorder %s21, 3
      %p51 = por %p49, %p50
      %p53 = scmp.ne.s32.totalorder %s38, %s52
      %p54 = scmp.eq.s32.totalorder %s21, 0
      %p55 = por %p53, %p54
      %s56 = ssub.s32 %s22, %s34
      %s57 = ssub.s32 %s23, %s30
      %s58 = sor.u32 %s56, %s57
      %p59 = scmp.eq.s32.totalorder %s58, 0
      %s61 = sadd.s32 %s60, 1
      %s62 = scalar_select %p59, %s60, %s61
      %p65 = pneg %p59
      %p66 = scmp.eq.s32.totalorder %s15, 3
      %p67 = por %p65, %p66
      %p68 = scmp.ne.s32.totalorder %s60, %s63
      %p69 = scmp.eq.s32.totalorder %s15, 0
      %p70 = por %p68, %p69
      %p71 = scmp.ne.s32.totalorder %s60, %s63
      %p72 = scmp.eq.s32.totalorder %s20, 3
      %p73 = por %p71, %p72
      %p74 = scmp.ne.s32.totalorder %s63, %s64
      %p75 = scmp.eq.s32.totalorder %s20, 0
      %p76 = por %p74, %p75
      %p77 = scmp.ne.s32.totalorder %s63, %s64
      %p78 = scmp.eq.s32.totalorder %s21, 3
      %p79 = por %p77, %p78
      %p81 = scmp.ne.s32.totalorder %s64, %s80
      %p82 = scmp.eq.s32.totalorder %s21, 0
      %p83 = por %p81, %p82
      %s84 = ssub.s32 %s22, %s34
      %s85 = ssub.s32 %s23, %s30
      %s86 = sor.u32 %s84, %s85
      %p87 = scmp.eq.s32.totalorder %s86, 0
      %s89 = sadd.s32 %s88, 1
      %s90 = scalar_select %p87, %s88, %s89
      %p93 = pneg %p87
      %p94 = scmp.eq.s32.totalorder %s15, 3
      %p95 = por %p93, %p94
      %p96 = scmp.ne.s32.totalorder %s88, %s91
      %p97 = scmp.eq.s32.totalorder %s15, 0
      %p98 = por %p96, %p97
      %p99 = scmp.ne.s32.totalorder %s88, %s91
      %p100 = scmp.eq.s32.totalorder %s20, 3
      %p101 = por %p99, %p100
      %p102 = scmp.ne.s32.totalorder %s91, %s92
      %p103 = scmp.eq.s32.totalorder %s20, 0
      %p104 = por %p102, %p103
      %p105 = scmp.ne.s32.totalorder %s91, %s92
      %p106 = scmp.eq.s32.totalorder %s21, 3
      %p107 = por %p105, %p106
      %p109 = scmp.ne.s32.totalorder %s92, %s108
      %p110 = scmp.eq.s32.totalorder %s21, 0
      %p111 = por %p109, %p110
      %p112 = scmp.le.s32.totalorder 1, %s15
      %p113 = scmp.lt.s32.totalorder %s15, 5
      %p114 = pnand %p112, %p113
      %p115 = pneg %p114
      // Predicated region
      $region9: #{tpu_custom_call.1} parent=5 // pred_check
        _
      $region10: #{tpu_custom_call.1} parent=5 // pred_check_branch
        %117 = sbr.rel (%p114) target = $region12
      $region11: #{tpu_custom_call.1} parent=5 // pred_region
        %s118 = ssub.s32 %s15, 1
        // Predicated region
        $region13: #{tpu_custom_call.1} parent=11 // pred_check
          %p119 = pneg %p48
        $region14: #{tpu_custom_call.1} parent=11 // pred_check_branch
          %121 = sbr.rel (%p119) target = $region16
        $region15: #{tpu_custom_call.1} parent=11 // pred_region
          %123 = vsyncadd [#allocation3], 0
          %s124 = sshll.u32 %s0, 4
          %s125 = int_to_ptr.hbm [resolvable:$true] %s124
          %s126 = sshll.u32 [#allocation2], 4
          %s127 = int_to_ptr.vmem [resolvable:$true] %s126
          %132 = dma.hbm_to_vmem [thread:$0]  %s125, 2048, %s127, [#allocation3], 128, 128, 8
        $region16: #{tpu_custom_call.1} parent=11 // pred_fallthru
          _
      $region12: #{tpu_custom_call.1} parent=5 // pred_fallthru
        _
      %p133 = scmp.lt.s32.totalorder %s15, 4
      // Predicated region
      $region17: #{tpu_custom_call.1} parent=5 // pred_check
        %p134 = pneg %p133
      $region18: #{tpu_custom_call.1} parent=5 // pred_check_branch
        %136 = sbr.rel (%p134) target = $region20
      $region19: #{tpu_custom_call.1} parent=5 // pred_region
        // Predicated region
        $region21: #{tpu_custom_call.1} parent=19 // pred_check
          %p137 = pneg %p70
        $region22: #{tpu_custom_call.1} parent=19 // pred_check_branch
          %139 = sbr.rel (%p137) target = $region24
        $region23: #{tpu_custom_call.1} parent=19 // pred_region
          %s140 = sand.u32 %s60, 1
          %s141 = scalar_lea.sflag [#allocation6], %s140
          %s142 = sand.u32 %s60, 1
          %s143 = smul.addr %s142, 128
          %s144 = scalar_lea.vmem [#allocation5], %s143
          %s145 = smul.u32 8, %s23
          %147 = vsyncadd %s141, 0
          %s148 = smul.addr %s145, 2
          %s149 = smul.addr %s22, 32
          %s150 = sadd.s32 %s148, %s149
          %s151 = smul.addr %s150, 8
          %s152 = scalar_lea.hbm %s1, %s151
          %s153 = sshll.u32 %s152, 4
          %s154 = int_to_ptr.hbm [resolvable:$true] %s153
          %s155 = sshll.u32 %s144, 4
          %s156 = int_to_ptr.vmem [resolvable:$true] %s155
          %161 = dma.hbm_to_vmem [thread:$0]  %s154, 2048, %s156, %s141, 128, 128, 8
        $region24: #{tpu_custom_call.1} parent=19 // pred_fallthru
          _
      $region20: #{tpu_custom_call.1} parent=5 // pred_fallthru
        _
      %p162 = scmp.le.s32.totalorder 1, %s15
      %p163 = scmp.lt.s32.totalorder %s15, 5
      %p164 = pnand %p162, %p163
      %p165 = pneg %p164
      // Predicated region
      $region25: #{tpu_custom_call.1} parent=5 // pred_check
        _
      $region26: #{tpu_custom_call.1} parent=5 // pred_check_branch
        %167 = sbr.rel (%p164) target = $region28
      $region27: #{tpu_custom_call.1} parent=5 // pred_region
        %s168 = ssub.s32 %s15, 1
        // Predicated region
        $region29: #{tpu_custom_call.1} parent=27 // pred_check
          %p169 = pneg %p48
        $region30: #{tpu_custom_call.1} parent=27 // pred_check_branch
          %171 = sbr.rel (%p169) target = $region32
        $region31: #{tpu_custom_call.1} parent=27 // pred_region
          %173 = dma.done [#allocation3], 2048
        $region32: #{tpu_custom_call.1} parent=27 // pred_fallthru
          _
        %s174 = sand.u32 %s63, 1
        %s175 = scalar_lea.sflag [#allocation6], %s174
        %s176 = sand.u32 %s63, 1
        %s177 = smul.addr %s176, 128
        %s178 = scalar_lea.vmem [#allocation5], %s177
        // Predicated region
        $region33: #{tpu_custom_call.1} parent=27 // pred_check
          %p179 = pneg %p76
        $region34: #{tpu_custom_call.1} parent=27 // pred_check_branch
          %181 = sbr.rel (%p179) target = $region36
        $region35: #{tpu_custom_call.1} parent=27 // pred_region
          %183 = dma.done %s175, 2048
        $region36: #{tpu_custom_call.1} parent=27 // pred_fallthru
          _
        %p184 = pneg %p48
        %p185 = pneg %p45
        %s186 = sand.u32 %s63, 1
        %s187 = scalar_lea.sflag [#allocation6], %s186
        %s188 = sand.u32 %s63, 1
        %s189 = smul.addr %s188, 128
        %s190 = scalar_lea.vmem [#allocation5], %s189
        %p191 = pneg %p76
        %p192 = pneg %p73
        %p193 = pneg %p104
        %p194 = pneg %p101
        %s195 = sand.u32 %s91, 1
        %s196 = scalar_lea.sflag [#allocation4], %s195
        %s197 = sand.u32 %s91, 1
        %s198 = smul.addr %s197, 128
        %s199 = scalar_lea.vmem [#allocation7], %s198
        %s200 = smul.u32 8, %s25
        %s201 = smul.u32 8, %s25
        %v202 = vld [vmem:[%s178] sm:$0xff]
        %v203 = vld [vmem:[%s178 + $0x8] sm:$0xff]
        %v204 = vld [vmem:[%s178 + $0x10] sm:$0xff]
        %v205 = vld [vmem:[%s178 + $0x18] sm:$0xff]
        %v206 = vld [vmem:[%s178 + $0x20] sm:$0xff]
        %v207 = vld [vmem:[%s178 + $0x28] sm:$0xff]
        %v208 = vld [vmem:[%s178 + $0x30] sm:$0xff]
        %v209 = vld [vmem:[%s178 + $0x38] sm:$0xff]
        %v210 = vld [vmem:[%s178 + $0x40] sm:$0xff]
        %v211 = vld [vmem:[%s178 + $0x48] sm:$0xff]
        %v212 = vld [vmem:[%s178 + $0x50] sm:$0xff]
        %v213 = vld [vmem:[%s178 + $0x58] sm:$0xff]
        %v214 = vld [vmem:[%s178 + $0x60] sm:$0xff]
        %v215 = vld [vmem:[%s178 + $0x68] sm:$0xff]
        %v216 = vld [vmem:[%s178 + $0x70] sm:$0xff]
        %v217 = vld [vmem:[%s178 + $0x78] sm:$0xff]
        %v218 = vld [vmem:[#allocation2] sm:$0xff]
        %v219 = vld [vmem:[#allocation2 + $0x8] sm:$0xff]
        %v220 = vld [vmem:[#allocation2 + $0x10] sm:$0xff]
        %v221 = vld [vmem:[#allocation2 + $0x18] sm:$0xff]
        %v222 = vld [vmem:[#allocation2 + $0x20] sm:$0xff]
        %v223 = vld [vmem:[#allocation2 + $0x28] sm:$0xff]
        %v224 = vld [vmem:[#allocation2 + $0x30] sm:$0xff]
        %v225 = vld [vmem:[#allocation2 + $0x38] sm:$0xff]
        %v226 = vld [vmem:[#allocation2 + $0x40] sm:$0xff]
        %v227 = vld [vmem:[#allocation2 + $0x48] sm:$0xff]
        %v228 = vld [vmem:[#allocation2 + $0x50] sm:$0xff]
        %v229 = vld [vmem:[#allocation2 + $0x58] sm:$0xff]
        %v230 = vld [vmem:[#allocation2 + $0x60] sm:$0xff]
        %v231 = vld [vmem:[#allocation2 + $0x68] sm:$0xff]
        %v232 = vld [vmem:[#allocation2 + $0x70] sm:$0xff]
        %v233 = vld [vmem:[#allocation2 + $0x78] sm:$0xff]
        %234 = vmatpush.msra.mxu0 %v217
        %235 = vmatpush.msra.mxu0 %v216
        %236 = vmatpush.msra.mxu0 %v215
        %237 = vmatpush.msra.mxu0 %v214
        %238 = vmatpush.msra.mxu0 %v213
        %239 = vmatpush.msra.mxu0 %v212
        %240 = vmatpush.msra.mxu0 %v211
        %241 = vmatpush.msra.mxu0 %v210
        %242 = vmatpush.msra.mxu0 %v209
        %243 = vmatpush.msra.mxu0 %v208
        %244 = vmatpush.msra.mxu0 %v207
        %245 = vmatpush.msra.mxu0 %v206
        %246 = vmatpush.msra.mxu0 %v205
        %247 = vmatpush.msra.mxu0 %v204
        %248 = vmatpush.msra.mxu0 %v203
        %249 = vmatpush.msra.mxu0 %v202
        %250 = vmatmul.f32.gmra.mxu0 %v218
        %v251 = vpop.f32.mrf.mxu0
        %v252 = vadd.f32 0.0, %v251
        %253 = vmatmul.f32.gmra.mxu0 %v219
        %v254 = vpop.f32.mrf.mxu0
        %v255 = vadd.f32 0.0, %v254
        %256 = vmatmul.f32.gmra.mxu0 %v220
        %v257 = vpop.f32.mrf.mxu0
        %v258 = vadd.f32 0.0, %v257
        %259 = vmatmul.f32.gmra.mxu0 %v221
        %v260 = vpop.f32.mrf.mxu0
        %v261 = vadd.f32 0.0, %v260
        %262 = vmatmul.f32.gmra.mxu0 %v222
        %v263 = vpop.f32.mrf.mxu0
        %v264 = vadd.f32 0.0, %v263
        %265 = vmatmul.f32.gmra.mxu0 %v223
        %v266 = vpop.f32.mrf.mxu0
        %v267 = vadd.f32 0.0, %v266
        %268 = vmatmul.f32.gmra.mxu0 %v224
        %v269 = vpop.f32.mrf.mxu0
        %v270 = vadd.f32 0.0, %v269
        %271 = vmatmul.f32.gmra.mxu0 %v225
        %v272 = vpop.f32.mrf.mxu0
        %v273 = vadd.f32 0.0, %v272
        %274 = vmatmul.f32.gmra.mxu0 %v226
        %v275 = vpop.f32.mrf.mxu0
        %v276 = vadd.f32 0.0, %v275
        %277 = vmatmul.f32.gmra.mxu0 %v227
        %v278 = vpop.f32.mrf.mxu0
        %v279 = vadd.f32 0.0, %v278
        %280 = vmatmul.f32.gmra.mxu0 %v228
        %v281 = vpop.f32.mrf.mxu0
        %v282 = vadd.f32 0.0, %v281
        %283 = vmatmul.f32.gmra.mxu0 %v229
        %v284 = vpop.f32.mrf.mxu0
        %v285 = vadd.f32 0.0, %v284
        %286 = vmatmul.f32.gmra.mxu0 %v230
        %v287 = vpop.f32.mrf.mxu0
        %v288 = vadd.f32 0.0, %v287
        %289 = vmatmul.f32.gmra.mxu0 %v231
        %v290 = vpop.f32.mrf.mxu0
        %v291 = vadd.f32 0.0, %v290
        %292 = vmatmul.f32.gmra.mxu0 %v232
        %v293 = vpop.f32.mrf.mxu0
        %v294 = vadd.f32 0.0, %v293
        %295 = vmatmul.f32.gmra.mxu0 %v233
        %v296 = vpop.f32.mrf.mxu0
        %v297 = vadd.f32 0.0, %v296
        %298 = vdwg.mxu0
        %299 = vst [vmem:[%s199] sm:$0xff] %v252
        %300 = vst [vmem:[%s199 + $0x8] sm:$0xff] %v255
        %301 = vst [vmem:[%s199 + $0x10] sm:$0xff] %v258
        %302 = vst [vmem:[%s199 + $0x18] sm:$0xff] %v261
        %303 = vst [vmem:[%s199 + $0x20] sm:$0xff] %v264
        %304 = vst [vmem:[%s199 + $0x28] sm:$0xff] %v267
        %305 = vst [vmem:[%s199 + $0x30] sm:$0xff] %v270
        %306 = vst [vmem:[%s199 + $0x38] sm:$0xff] %v273
        %307 = vst [vmem:[%s199 + $0x40] sm:$0xff] %v276
        %308 = vst [vmem:[%s199 + $0x48] sm:$0xff] %v279
        %309 = vst [vmem:[%s199 + $0x50] sm:$0xff] %v282
        %310 = vst [vmem:[%s199 + $0x58] sm:$0xff] %v285
        %311 = vst [vmem:[%s199 + $0x60] sm:$0xff] %v288
        %312 = vst [vmem:[%s199 + $0x68] sm:$0xff] %v291
        %313 = vst [vmem:[%s199 + $0x70] sm:$0xff] %v294
        %314 = vst [vmem:[%s199 + $0x78] sm:$0xff] %v297
        %s315 = sand.u32 %s91, 1
        %s316 = scalar_lea.sflag [#allocation4], %s315
        %s317 = sand.u32 %s91, 1
        %s318 = smul.addr %s317, 128
        %s319 = scalar_lea.vmem [#allocation7], %s318
        // Predicated region
        $region37: #{tpu_custom_call.1} parent=27 // pred_check
          %p320 = pneg %p101
        $region38: #{tpu_custom_call.1} parent=27 // pred_check_branch
          %322 = sbr.rel (%p320) target = $region40
        $region39: #{tpu_custom_call.1} parent=27 // pred_region
          %s323 = smul.u32 8, %s25
          %325 = vsyncadd %s316, 0
          %s326 = smul.addr %s323, 2
          %s327 = smul.addr %s24, 32
          %s328 = sadd.s32 %s326, %s327
          %s329 = smul.addr %s328, 8
          %s330 = scalar_lea.hbm %s2, %s329
          %s331 = sshll.u32 %s319, 4
          %s332 = int_to_ptr.vmem [resolvable:$true] %s331
          %s333 = sshll.u32 %s330, 4
          %s334 = int_to_ptr.hbm [resolvable:$true] %s333
          %339 = dma.vmem_to_hbm [thread:$0]  %s332, 2048, %s334, %s316, 128, 128, 8
        $region40: #{tpu_custom_call.1} parent=27 // pred_fallthru
          _
      $region28: #{tpu_custom_call.1} parent=5 // pred_fallthru
        _
      %p340 = scmp.le.s32.totalorder 2, %s15
      // Predicated region
      $region41: #{tpu_custom_call.1} parent=5 // pred_check
        %p341 = pneg %p340
      $region42: #{tpu_custom_call.1} parent=5 // pred_check_branch
        %343 = sbr.rel (%p341) target = $region44
      $region43: #{tpu_custom_call.1} parent=5 // pred_region
        %s344 = ssub.s32 %s15, 2
        // Predicated region
        $region45: #{tpu_custom_call.1} parent=43 // pred_check
          %p345 = pneg %p107
        $region46: #{tpu_custom_call.1} parent=43 // pred_check_branch
          %347 = sbr.rel (%p345) target = $region48
        $region47: #{tpu_custom_call.1} parent=43 // pred_region
          %s348 = sand.u32 %s92, 1
          %s349 = scalar_lea.sflag [#allocation4], %s348
          %s350 = sand.u32 %s92, 1
          %s351 = smul.addr %s350, 128
          %s352 = scalar_lea.vmem [#allocation7], %s351
          %354 = dma.done %s349, 2048
        $region48: #{tpu_custom_call.1} parent=43 // pred_fallthru
          _
      $region44: #{tpu_custom_call.1} parent=5 // pred_fallthru
        _
    $region6: #{tpu_custom_call.1} parent=1 // loop_footer
      %s19 = sadd.s32 1, %s15
    $region7: #{tpu_custom_call.1} parent=1 // loop_footer_branch
      %14 = sbr.rel target = $region3
    $region8: #{tpu_custom_call.1} parent=1 // loop_exit
      _
    %355 = vsyncpa [#allocation3], 1
    %s356 = scalar_lea.sflag [#allocation3], 1
    %357 = vsyncpa %s356, 1
    %358 = vsyncpa [#allocation6], 1
    %s359 = scalar_lea.sflag [#allocation6], 1
    %360 = vsyncpa %s359, 1
    %361 = vsyncpa [#allocation4], 1
    %s362 = scalar_lea.sflag [#allocation4], 1
    %363 = vsyncpa %s362, 1

</llo_original>
